<compile_context>
chip_gen: v7x
topology: tpu7x:2x2x1
jax: 0.10.0
libtpu: 0.0.40
codegen_flags: <defaults>
</compile_context>

<pallas_src>
import numpy as np
import jax
import jax.numpy as jnp
from jax import lax
from jax.experimental import pallas as pl
from jax.experimental.pallas import tpu as pltpu


def _round_up(x, m):
    return ((x + m - 1) // m) * m


# ---------------------------------------------------------------------------
# Pallas kernel: single fused real matmul implementing the complex 1x1 conv.
# ---------------------------------------------------------------------------
def _fused_complex_matmul_kernel(x2_ref, w2_ref, y2_ref):
    # x2_ref: (2C, T) stacked [xr; xi]   w2_ref: (2K, 2C) = [[wr,-wi],[wi,wr]]
    # y2_ref: (2K, T) stacked [yr; yi]
    y2_ref[...] = jnp.dot(
        w2_ref[...], x2_ref[...],
        preferred_element_type=jnp.float32,
    ).astype(y2_ref.dtype)


def complex_conv2d_1x1(x, w2, out_channels, *, tile_hw=2048,
                       compute_dtype=jnp.float32,
                       vmem_budget_bytes=12 << 20):
    """x: (B, C, H, W) complex (or real) array, w2: fused (2K, 2C) real weight."""
    B, C, H, W = x.shape
    K = out_channels
    HW = H * W
    C2, K2 = 2 * C, 2 * K
    assert w2.shape == (K2, C2)

    # --- activation glue: split real/imag, keep spatial as the lane axis ------
    # (B, 2C, H*W); no spatial transpose is needed, only the (unavoidable)
    # complex de-interleave, which XLA fuses with the concat + cast.
    # TODO(synk): de-interleaving complex64 inside the kernel would need a
    # complex->f32 bitcast view; Pallas refs do not take complex dtypes, so the
    # split/recombine stays as thin plain-JAX glue.
    x2 = jnp.concatenate([jnp.real(x), jnp.imag(x)], axis=1)
    x2 = x2.reshape(B, C2, HW).astype(compute_dtype)
    w2 = w2.astype(compute_dtype)

    in_itemsize = jnp.dtype(compute_dtype).itemsize
    out_itemsize = 4  # f32 accumulator output planes

    # --- tile selection --------------------------------------------------------
    lane = 128
    tile = min(_round_up(tile_hw, lane), _round_up(HW, lane))

    def _step_vmem_bytes(t):
        # double-buffered input + output blocks, plus the (tiny) resident weight
        return 2 * t * (C2 * in_itemsize + K2 * out_itemsize) + K2 * C2 * in_itemsize

    while tile > lane and _step_vmem_bytes(tile) > vmem_budget_bytes:
        tile -= lane

    # v7x has 2 TensorCores: make sure the (parallel, parallel) grid has >= 2
    # steps so one core is not idle. Free on v5e/v6e (1 TC).
    if B * pl.cdiv(HW, tile) < 2 and tile > lane:
        tile = max(lane, _round_up(pl.cdiv(HW, 2), lane))

    hw_pad = _round_up(HW, tile)
    if hw_pad != HW:
        x2 = jnp.pad(x2, ((0, 0), (0, 0), (0, hw_pad - HW)))

    grid = (B, hw_pad // tile)

    x_spec = pl.BlockSpec((None, C2, tile), lambda b, t: (b, 0, t))
    w_spec = pl.BlockSpec((K2, C2), lambda b, t: (0, 0))      # resident weight
    y_spec = pl.BlockSpec((None, K2, tile), lambda b, t: (b, 0, t))

    flops = 2 * B * hw_pad * K2 * C2
    bytes_accessed = (B * C2 * hw_pad * in_itemsize          # X2 planes
                      + K2 * C2 * in_itemsize                # W2
                      + B * K2 * hw_pad * out_itemsize)      # Y2 planes

    y2 = pl.pallas_call(
        _fused_complex_matmul_kernel,
        out_shape=jax.ShapeDtypeStruct((B, K2, hw_pad), jnp.float32),
        grid_spec=pltpu.PrefetchScalarGridSpec(
            num_scalar_prefetch=0,
            grid=grid,
            in_specs=[x_spec, w_spec],
            out_specs=y_spec),
        compiler_params=pltpu.CompilerParams(
            dimension_semantics=("parallel", "parallel"),
            vmem_limit_bytes=32 << 20),
        cost_estimate=pl.CostEstimate(flops=flops, transcendentals=0,
                                      bytes_accessed=bytes_accessed),
    )(x2, w2)

    yr = y2[:, :K, :HW]
    yi = y2[:, K:, :HW]
    y = lax.complex(yr, yi).reshape(B, K, H, W)   # NCHW already; reshape is free
    return y.astype(jnp.complex64)


# ---------------------------------------------------------------------------
# Parameter init (mirrors torch unitary_init) and module wrapper.
# ---------------------------------------------------------------------------
def unitary_init(shape, key):
    """Complex weight whose (N, prod(rest)) matricization has unitary rows/cols."""
    N = shape[0]
    C = int(np.prod(shape[1:]))
    kr, ki = jax.random.split(key)
    # SVD done on host with numpy (deterministic, avoids complex-SVD on device).
    rand = (np.asarray(jax.random.normal(kr, (N, C), dtype=jnp.float32))
            + 1j * np.asarray(jax.random.normal(ki, (N, C), dtype=jnp.float32))
            ).astype(np.complex64)
    u, _, vh = np.linalg.svd(rand, full_matrices=False)
    m = u if N > C else vh
    return jnp.asarray(m.reshape(shape), dtype=jnp.complex64)


class ComplexConv2d:
    """JAX/Pallas port of the torch ComplexConv2d (1x1 kernel, complex weights)."""

    def __init__(self, in_channels, out_channels, complex_weights=True,
                 key=jax.random.PRNGKey(0), compute_dtype=jnp.float32):
        self.in_channels = in_channels
        self.is_identity = out_channels in [id, "id"]
        self.out_channels = in_channels if self.is_identity else out_channels
        self.complex_weights = complex_weights
        # compute_dtype=jnp.bfloat16 halves input DMA traffic (mem-bound op) at
        # ~1e-3 relative accuracy; default f32 keeps torch-level numerics.
        self.compute_dtype = compute_dtype

        if self.is_identity or self.out_channels == 0:
            self.param = None
            self.w2 = None
        else:
            shape = (self.out_channels, in_channels, 1, 1)
            if complex_weights:
                self.param = unitary_init(shape, key)
            else:
                # real weights (not the default path for this module)
                self.param = (jax.random.normal(key, shape, dtype=jnp.float32)
                              / np.sqrt(in_channels)).astype(jnp.complex64)
            # Pre-split + pre-fuse the weight at init time so the forward pass
            # does zero weight real/imag-extraction passes:
            #   W2 = [[wr, -wi], [wi, wr]]  of shape (2K, 2C)
            wr = jnp.real(self.param).reshape(self.out_channels, in_channels)
            wi = jnp.imag(self.param).reshape(self.out_channels, in_channels)
            self.w2 = jnp.concatenate(
                [jnp.concatenate([wr, -wi], axis=1),
                 jnp.concatenate([wi, wr], axis=1)], axis=0).astype(jnp.float32)

    def __call__(self, x):
        if self.is_identity:
            return x
        if self.out_channels == 0:
            return jnp.empty((x.shape[0], 0) + x.shape[2:], dtype=jnp.complex64)
        return complex_conv2d_1x1(x, self.w2, self.out_channels,
                                  compute_dtype=self.compute_dtype)


# ---------------------------------------------------------------------------
if __name__ == "__main__":
    B, C, H, W = 2, 4, 16, 16
    K = 8

    key = jax.random.PRNGKey(0)
    kx_r, kx_i, kw = jax.random.split(key, 3)
    x = (jax.random.normal(kx_r, (B, C, H, W), dtype=jnp.float32)
         + 1j * jax.random.normal(kx_i, (B, C, H, W), dtype=jnp.float32)
         ).astype(jnp.complex64)

    module = ComplexConv2d(in_channels=C, out_channels=K,
                           complex_weights=True, key=kw)

    y = module(x)
    y = jax.block_until_ready(y)

    # Pure-JAX reference: complex 1x1 conv == einsum over the channel dim.
    w_mat = module.param.reshape(K, C)
    y_ref = jnp.einsum("kc,bchw->bkhw", w_mat, x)

    assert y.shape == (B, K, H, W) and y.dtype == jnp.complex64
    np.testing.assert_allclose(np.asarray(y), np.asarray(y_ref),
                               rtol=1e-4, atol=1e-4)
    print("KERNEL_OK")
</pallas_src>

<mosaic_0001>
module attributes {stable_mosaic.version = 11 : i64} {
  func.func @_fused_complex_matmul_kernel(%arg0: i32, %arg1: i32, %arg2: memref<1x8x256xf32, #tpu.memory_space<vmem>>, %arg3: memref<16x8xf32, #tpu.memory_space<vmem>>, %arg4: memref<1x16x256xf32, #tpu.memory_space<vmem>>) attributes {dimension_semantics = [#tpu.dimension_semantics<parallel>, #tpu.dimension_semantics<parallel>], iteration_bounds = array<i64: 2, 1>, scalar_prefetch = 0 : i64, scratch_operands = 0 : i64, tpu.core_type = #tpu.core_type<tc>, window_params = [{transform_indices = @transform_0, window_bounds = array<i64: 1, 8, 256>}, {pipeline_mode = #tpu.pipeline_mode<synchronous>, transform_indices = @transform_1, window_bounds = array<i64: 16, 8>}, {transform_indices = @transform_2, window_bounds = array<i64: 1, 16, 256>}]} {
    %c0 = arith.constant 0 : index
    %c0_0 = arith.constant 0 : index
    %0 = vector.load %arg3[%c0, %c0_0] : memref<16x8xf32, #tpu.memory_space<vmem>>, vector<16x8xf32>
    %c0_1 = arith.constant 0 : index
    %c0_2 = arith.constant 0 : index
    %c0_3 = arith.constant 0 : index
    %1 = vector.load %arg2[%c0_1, %c0_2, %c0_3] : memref<1x8x256xf32, #tpu.memory_space<vmem>>, vector<1x8x256xf32>
    %2 = vector.shape_cast %1 : vector<1x8x256xf32> to vector<8x256xf32>
    %cst = arith.constant dense<0.000000e+00> : vector<16x256xf32>
    %3 = tpu.matmul %0, %2, %cst {dimension_numbers = #tpu.dot_dimension_numbers<[1], [0], [0], [1], [0, 0, 1, 1], [], []>} : vector<16x8xf32>, vector<8x256xf32>, vector<16x256xf32> -> vector<16x256xf32>
    %c0_4 = arith.constant 0 : index
    %c0_5 = arith.constant 0 : index
    %c0_6 = arith.constant 0 : index
    %4 = vector.load %arg4[%c0_4, %c0_5, %c0_6] : memref<1x16x256xf32, #tpu.memory_space<vmem>>, vector<1x16x256xf32>
    %5 = vector.shape_cast %4 : vector<1x16x256xf32> to vector<16x256xf32>
    %6 = vector.shape_cast %3 : vector<16x256xf32> to vector<1x16x256xf32>
    tpu.vector_store %arg4[%c0_4, %c0_5, %c0_6], %6 {strides = array<i32>} : memref<1x16x256xf32, #tpu.memory_space<vmem>>, vector<1x16x256xf32>,
    return
  }
  func.func @transform_0(%arg0: i32, %arg1: i32) -> (i32, i32, i32) {
    %c0_i32 = arith.constant 0 : i32
    %c0_i32_0 = arith.constant 0 : i32
    return %arg0, %c0_i32, %arg1 : i32, i32, i32
  }
  func.func @transform_1(%arg0: i32, %arg1: i32) -> (i32, i32) {
    %c0_i32 = arith.constant 0 : i32
    %c0_i32_0 = arith.constant 0 : i32
    %c0_i32_1 = arith.constant 0 : i32
    return %c0_i32, %c0_i32_0 : i32, i32
  }
  func.func @transform_2(%arg0: i32, %arg1: i32) -> (i32, i32, i32) {
    %c0_i32 = arith.constant 0 : i32
    %c0_i32_0 = arith.constant 0 : i32
    return %arg0, %c0_i32, %arg1 : i32, i32, i32
  }
}

</mosaic_0001>

<llo_original>
// kernel: tpu_custom_call.1
$region0: #{tpu_custom_call.1}
  #allocation0 [shape = 'u32[]', space=smem, size = 0x4, offset = 0x4, fixed_abs, tag = 'smem constant byte address 0x4 - core index']
  #allocation1 [shape = 'u32[144,128]{1,0:T(1,128)}', space=vmem, size = 0x12000, scoped, tag = 'internal scratch']
  %s0 = inlined_call_operand.hbm [shape: f32[2,8,256], index: 0, kind: input, shape index: {}]
  %s1 = inlined_call_operand.vmem [shape: f32[16,8], index: 1, kind: input, shape index: {}]
  %s2 = inlined_call_operand.hbm [shape: f32[2,16,256], index: 2, kind: output, shape index: {}]
  %s3 = sld [smem:[#allocation0]]
  $region45: #{tpu_custom_call.1} parent=0
    _
  %s5 = ssub.s32 1, %s3
  %s6 = scalar_select 0, %s5, %s3
  $region1: #{tpu_custom_call.1} parent=0
    #allocation2 [shape = 'u8[16384]{0}', space=vmem, size = 0x4000, scoped, tag = 'input window, operand 0']
    #allocation3 [shape = 's32[2]{0}', space=sflag, size = 0x8, scoped, tag = 'scoped memory for tpu_custom_call.1']
    #allocation4 [shape = 's32[2]{0}', space=sflag, size = 0x8, scoped, tag = 'scoped memory for tpu_custom_call.1']
    #allocation5 [shape = 'u8[32768]{0}', space=vmem, size = 0x8000, scoped, tag = 'output window, operand 0']
    %7 = vsyncpa [#allocation3], 0
    %s8 = scalar_lea.sflag [#allocation3], 1
    %9 = vsyncpa %s8, 0
    %10 = vsyncpa [#allocation4], 0
    %s11 = scalar_lea.sflag [#allocation4], 1
    %12 = vsyncpa %s11, 0
    loop: start=0, step=1, limit=4
    $region2: #{tpu_custom_call.1} parent=1 // loop_pre_header
      _
    $region3: #{tpu_custom_call.1} parent=1 // loop_header
      %s14 = sphi 0, %s18
      %p15 = scmp.ge.s32.totalorder %s14, 4
      %s21 = sphi 0, %s33
      %s22 = sphi 0, %s29
      %s23 = sphi 0, %s21
      %s24 = sphi 0, %s22
      %s25 = sphi 0, %s23
      %s26 = sphi 0, %s24
      %s38 = sphi 0, %s40
      %s41 = sphi 0, %s38
      %s42 = sphi 0, %s41
      %s58 = sphi 0, %s42
      %s62 = sphi 0, %s62
      %s64 = sphi 0, %s62
      %s65 = sphi 0, %s64
      %s79 = sphi 0, %s65
      %s87 = sphi 0, %s89
      %s90 = sphi 0, %s87
      %s91 = sphi 0, %s90
      %s107 = sphi 0, %s91
    $region4: #{tpu_custom_call.1} parent=1 // loop_header_branch
      %17 = sbr.rel (%p15) target = $region8
    $region5: #{tpu_custom_call.1} parent=1 // loop_body
      %s19 = ssub.s32 %s14, 1
      %s20 = ssub.s32 %s14, 2
      %s27 = sadd.s32 1, %s22
      %p28 = scmp.ge.s32.totalorder %s27, 1
      %s29 = scalar_select %p28, 0, %s27
      %s30 = sadd.s32 1, %s21
      %s31 = scalar_select %p28, %s30, %s21
      %p32 = scmp.ge.s32.totalorder %s31, 2
      %s33 = scalar_select %p32, 0, %s31
      %s34 = ssub.s32 %s21, %s33
      %s35 = ssub.s32 %s22, %s29
      %s36 = sor.u32 %s34, %s35
      %p37 = scmp.eq.s32.totalorder %s36, 0
      %s39 = sadd.s32 %s38, 1
      %s40 = scalar_select %p37, %s38, %s39
      %p43 = pneg %p37
      %p44 = scmp.eq.s32.totalorder %s14, 1
      %p45 = por %p43, %p44
      %p46 = scmp.ne.s32.totalorder %s38, %s41
      %p47 = scmp.eq.s32.totalorder %s14, 0
      %p48 = por %p46, %p47
      %p49 = scmp.ne.s32.totalorder %s38, %s41
      %p50 = scmp.eq.s32.totalorder %s19, 1
      %p51 = por %p49, %p50
      %p52 = scmp.ne.s32.totalorder %s41, %s42
      %p53 = scmp.eq.s32.totalorder %s19, 0
      %p54 = por %p52, %p53
      %p55 = scmp.ne.s32.totalorder %s41, %s42
      %p56 = scmp.eq.s32.totalorder %s20, 1
      %p57 = por %p55, %p56
      %p59 = scmp.ne.s32.totalorder %s42, %s58
      %p60 = scmp.eq.s32.totalorder %s20, 0
      %p61 = por %p59, %p60
      %s63 = sadd.s32 %s62, 1
      %p66 = scmp.eq.s32.totalorder %s14, 1
      %p67 = scmp.ne.s32.totalorder %s62, %s64
      %p68 = scmp.eq.s32.totalorder %s14, 0
      %p69 = por %p67, %p68
      %p70 = scmp.ne.s32.totalorder %s62, %s64
      %p71 = scmp.eq.s32.totalorder %s19, 1
      %p72 = por %p70, %p71
      %p73 = scmp.ne.s32.totalorder %s64, %s65
      %p74 = scmp.eq.s32.totalorder %s19, 0
      %p75 = por %p73, %p74
      %p76 = scmp.ne.s32.totalorder %s64, %s65
      %p77 = scmp.eq.s32.totalorder %s20, 1
      %p78 = por %p76, %p77
      %p80 = scmp.ne.s32.totalorder %s65, %s79
      %p81 = scmp.eq.s32.totalorder %s20, 0
      %p82 = por %p80, %p81
      %s83 = ssub.s32 %s21, %s33
      %s84 = ssub.s32 %s22, %s29
      %s85 = sor.u32 %s83, %s84
      %p86 = scmp.eq.s32.totalorder %s85, 0
      %s88 = sadd.s32 %s87, 1
      %s89 = scalar_select %p86, %s87, %s88
      %p92 = pneg %p86
      %p93 = scmp.eq.s32.totalorder %s14, 1
      %p94 = por %p92, %p93
      %p95 = scmp.ne.s32.totalorder %s87, %s90
      %p96 = scmp.eq.s32.totalorder %s14, 0
      %p97 = por %p95, %p96
      %p98 = scmp.ne.s32.totalorder %s87, %s90
      %p99 = scmp.eq.s32.totalorder %s19, 1
      %p100 = por %p98, %p99
      %p101 = scmp.ne.s32.totalorder %s90, %s91
      %p102 = scmp.eq.s32.totalorder %s19, 0
      %p103 = por %p101, %p102
      %p104 = scmp.ne.s32.totalorder %s90, %s91
      %p105 = scmp.eq.s32.totalorder %s20, 1
      %p106 = por %p104, %p105
      %p108 = scmp.ne.s32.totalorder %s91, %s107
      %p109 = scmp.eq.s32.totalorder %s20, 0
      %p110 = por %p108, %p109
      %p111 = scmp.le.s32.totalorder 1, %s14
      %p112 = scmp.lt.s32.totalorder %s14, 3
      %p113 = pnand %p111, %p112
      %p114 = pneg %p113
      // Predicated region
      $region9: #{tpu_custom_call.1} parent=5 // pred_check
        _
      $region10: #{tpu_custom_call.1} parent=5 // pred_check_branch
        %116 = sbr.rel (%p113) target = $region12
      $region11: #{tpu_custom_call.1} parent=5 // pred_region
        %s117 = ssub.s32 %s14, 1
        // Predicated region
        $region13: #{tpu_custom_call.1} parent=11 // pred_check
          %p118 = pneg %p75
        $region14: #{tpu_custom_call.1} parent=11 // pred_check_branch
          %120 = sbr.rel (%p118) target = $region16
        $region15: #{tpu_custom_call.1} parent=11 // pred_region
          _
        $region16: #{tpu_custom_call.1} parent=11 // pred_fallthru
          _
      $region12: #{tpu_custom_call.1} parent=5 // pred_fallthru
        _
      %p121 = scmp.lt.s32.totalorder %s14, 2
      // Predicated region
      $region17: #{tpu_custom_call.1} parent=5 // pred_check
        %p122 = pneg %p121
      $region18: #{tpu_custom_call.1} parent=5 // pred_check_branch
        %124 = sbr.rel (%p122) target = $region20
      $region19: #{tpu_custom_call.1} parent=5 // pred_region
        // Predicated region
        $region21: #{tpu_custom_call.1} parent=19 // pred_check
          %p125 = pneg %p48
        $region22: #{tpu_custom_call.1} parent=19 // pred_check_branch
          %127 = sbr.rel (%p125) target = $region24
        $region23: #{tpu_custom_call.1} parent=19 // pred_region
          %s128 = sand.u32 %s38, 1
          %s129 = scalar_lea.sflag [#allocation3], %s128
          %s130 = sand.u32 %s38, 1
          %s131 = smul.addr %s130, 16
          %s132 = scalar_lea.vmem [#allocation2], %s131
          %s133 = smul.u32 2, %s22
          %s135 = ssub.s32 256, 256
          %136 = vsyncadd %s129, %s135
          %s137 = smul.addr %s21, 2
          %s138 = sadd.s32 %s133, %s137
          %s139 = smul.addr %s138, 128
          %s140 = scalar_lea.hbm %s0, %s139
          %s142 = sshll.u32 %s132, 4
          %s143 = int_to_ptr.vmem [resolvable:$true] %s142
          %145 = dma.hbm_to_vmem [thread:$0]  %s140, 256, %s143, %s129
        $region24: #{tpu_custom_call.1} parent=19 // pred_fallthru
          _
      $region20: #{tpu_custom_call.1} parent=5 // pred_fallthru
        _
      %p146 = scmp.le.s32.totalorder 1, %s14
      %p147 = scmp.lt.s32.totalorder %s14, 3
      %p148 = pnand %p146, %p147
      %p149 = pneg %p148
      // Predicated region
      $region25: #{tpu_custom_call.1} parent=5 // pred_check
        _
      $region26: #{tpu_custom_call.1} parent=5 // pred_check_branch
        %151 = sbr.rel (%p148) target = $region28
      $region27: #{tpu_custom_call.1} parent=5 // pred_region
        %s152 = ssub.s32 %s14, 1
        %s153 = sand.u32 %s41, 1
        %s154 = scalar_lea.sflag [#allocation3], %s153
        %s155 = sand.u32 %s41, 1
        %s156 = smul.addr %s155, 16
        %s157 = scalar_lea.vmem [#allocation2], %s156
        // Predicated region
        $region29: #{tpu_custom_call.1} parent=27 // pred_check
          %p158 = pneg %p54
        $region30: #{tpu_custom_call.1} parent=27 // pred_check_branch
          %160 = sbr.rel (%p158) target = $region32
        $region31: #{tpu_custom_call.1} parent=27 // pred_region
          %161 = dma.done %s154, 256
        $region32: #{tpu_custom_call.1} parent=27 // pred_fallthru
          _
        %s162 = sand.u32 %s41, 1
        %s163 = scalar_lea.sflag [#allocation3], %s162
        %s164 = sand.u32 %s41, 1
        %s165 = smul.addr %s164, 16
        %s166 = scalar_lea.vmem [#allocation2], %s165
        %p167 = pneg %p54
        %p168 = pneg %p51
        %p169 = pneg %p75
        %p170 = pneg %p72
        %p171 = pneg %p103
        %p172 = pneg %p100
        %s173 = sand.u32 %s90, 1
        %s174 = scalar_lea.sflag [#allocation4], %s173
        %s175 = sand.u32 %s90, 1
        %s176 = smul.addr %s175, 32
        %s177 = scalar_lea.vmem [#allocation5], %s176
        %s178 = smul.u32 2, %s24
        %s179 = smul.u32 2, %s24
        %v180 = vld [vmem:[%s1] sm:$0xff]
        %v181 = vld [vmem:[%s1 + $0x8] sm:$0xff]
        %v182 = vld [vmem:[%s157] sm:$0xff]
        %v183 = vld [vmem:[%s157 + $0x8] sm:$0xff]
        %vm184 = vcmask 64512
        %v186 = vsel %vm184, %v180, 0
        %v189 = vsel %vm184, %v181, 0
        %191 = vmatprep.subr.mxu0 %v183
        %192 = vmatpush1.msra.mxu0 %v182
        %193 = vmatprep.subr.mxu0 0.0
        %194 = vmatpush1.msra.mxu0 0.0
        %195 = vmatprep.subr.mxu0 0.0
        %196 = vmatpush1.msra.mxu0 0.0
        %197 = vmatprep.subr.mxu0 0.0
        %198 = vmatpush1.msra.mxu0 0.0
        %199 = vmatprep.subr.mxu0 0.0
        %200 = vmatpush1.msra.mxu0 0.0
        %201 = vmatprep.subr.mxu0 0.0
        %202 = vmatpush1.msra.mxu0 0.0
        %203 = vmatprep.subr.mxu0 0.0
        %204 = vmatpush1.msra.mxu0 0.0
        %205 = vmatprep.subr.mxu0 0.0
        %206 = vmatpush1.msra.mxu0 0.0
        %207 = vmatprep.subr.mxu0 0.0
        %208 = vmatpush1.msra.mxu0 0.0
        %209 = vmatprep.subr.mxu0 0.0
        %210 = vmatpush1.msra.mxu0 0.0
        %211 = vmatprep.subr.mxu0 0.0
        %212 = vmatpush1.msra.mxu0 0.0
        %213 = vmatprep.subr.mxu0 0.0
        %214 = vmatpush1.msra.mxu0 0.0
        %215 = vmatprep.subr.mxu0 0.0
        %216 = vmatpush1.msra.mxu0 0.0
        %217 = vmatprep.subr.mxu0 0.0
        %218 = vmatpush1.msra.mxu0 0.0
        %219 = vmatprep.subr.mxu0 0.0
        %220 = vmatpush1.msra.mxu0 0.0
        %221 = vmatprep.subr.mxu0 0.0
        %222 = vmatpush1.msra.mxu0 0.0
        %223 = vmatprep.subr.mxu0 0.0
        %224 = vmatpush1.msra.mxu0 0.0
        %225 = vmatprep.subr.mxu0 0.0
        %226 = vmatpush1.msra.mxu0 0.0
        %227 = vmatprep.subr.mxu0 0.0
        %228 = vmatpush1.msra.mxu0 0.0
        %229 = vmatprep.subr.mxu0 0.0
        %230 = vmatpush1.msra.mxu0 0.0
        %231 = vmatprep.subr.mxu0 0.0
        %232 = vmatpush1.msra.mxu0 0.0
        %233 = vmatprep.subr.mxu0 0.0
        %234 = vmatpush1.msra.mxu0 0.0
        %235 = vmatprep.subr.mxu0 0.0
        %236 = vmatpush1.msra.mxu0 0.0
        %237 = vmatprep.subr.mxu0 0.0
        %238 = vmatpush1.msra.mxu0 0.0
        %239 = vmatprep.subr.mxu0 0.0
        %240 = vmatpush1.msra.mxu0 0.0
        %241 = vmatprep.subr.mxu0 0.0
        %242 = vmatpush1.msra.mxu0 0.0
        %243 = vmatprep.subr.mxu0 0.0
        %244 = vmatpush1.msra.mxu0 0.0
        %245 = vmatprep.subr.mxu0 0.0
        %246 = vmatpush1.msra.mxu0 0.0
        %247 = vmatprep.subr.mxu0 0.0
        %248 = vmatpush1.msra.mxu0 0.0
        %249 = vmatprep.subr.mxu0 0.0
        %250 = vmatpush1.msra.mxu0 0.0
        %251 = vmatprep.subr.mxu0 0.0
        %252 = vmatpush1.msra.mxu0 0.0
        %253 = vmatprep.subr.mxu0 0.0
        %254 = vmatpush1.msra.mxu0 0.0
        %255 = vmatprep.mubr.f32.mxu0 0.0
        %256 = vmatmul.mubr.f32.gmra.mrb[0].mxu0 %v186
        %v257 = vpop.f32.mrb[0].mxu0
        %v258 = vadd.f32 0.0, %v257
        %v259 = vpop.f32.mrb[0].mxu0
        %v260 = vadd.f32 0.0, %v259
        %261 = vmatprep.mubr.f32.mxu0 0.0
        %262 = vmatmul.mubr.f32.gmra.mrb[0].mxu0 %v189
        %v263 = vpop.f32.mrb[0].mxu0
        %v264 = vadd.f32 0.0, %v263
        %v265 = vpop.f32.mrb[0].mxu0
        %v266 = vadd.f32 0.0, %v265
        %267 = vdwg.mxu0
        %268 = vst [vmem:[%s177] sm:$0xff] %v258
        %269 = vst [vmem:[%s177 + $0x8] sm:$0xff] %v260
        %270 = vst [vmem:[%s177 + $0x10] sm:$0xff] %v264
        %271 = vst [vmem:[%s177 + $0x18] sm:$0xff] %v266
        %s272 = sand.u32 %s90, 1
        %s273 = scalar_lea.sflag [#allocation4], %s272
        %s274 = sand.u32 %s90, 1
        %s275 = smul.addr %s274, 32
        %s276 = scalar_lea.vmem [#allocation5], %s275
        // Predicated region
        $region33: #{tpu_custom_call.1} parent=27 // pred_check
          %p277 = pneg %p100
        $region34: #{tpu_custom_call.1} parent=27 // pred_check_branch
          %279 = sbr.rel (%p277) target = $region36
        $region35: #{tpu_custom_call.1} parent=27 // pred_region
          %s280 = smul.u32 2, %s24
          %s282 = ssub.s32 512, 512
          %283 = vsyncadd %s273, %s282
          %s284 = smul.addr %s23, 4
          %s285 = sadd.s32 %s280, %s284
          %s286 = smul.addr %s285, 128
          %s287 = scalar_lea.hbm %s2, %s286
          %s288 = sshll.u32 %s276, 4
          %s289 = int_to_ptr.vmem [resolvable:$true] %s288
          %294 = dma.vmem_to_hbm [thread:$0]  %s289, 512, %s287, %s273, 256, 256, 16
        $region36: #{tpu_custom_call.1} parent=27 // pred_fallthru
          _
      $region28: #{tpu_custom_call.1} parent=5 // pred_fallthru
        _
      %p295 = scmp.le.s32.totalorder 2, %s14
      // Predicated region
      $region37: #{tpu_custom_call.1} parent=5 // pred_check
        %p296 = pneg %p295
      $region38: #{tpu_custom_call.1} parent=5 // pred_check_branch
        %298 = sbr.rel (%p296) target = $region40
      $region39: #{tpu_custom_call.1} parent=5 // pred_region
        %s299 = ssub.s32 %s14, 2
        // Predicated region
        $region41: #{tpu_custom_call.1} parent=39 // pred_check
          %p300 = pneg %p106
        $region42: #{tpu_custom_call.1} parent=39 // pred_check_branch
          %302 = sbr.rel (%p300) target = $region44
        $region43: #{tpu_custom_call.1} parent=39 // pred_region
          %s303 = sand.u32 %s91, 1
          %s304 = scalar_lea.sflag [#allocation4], %s303
          %s305 = sand.u32 %s91, 1
          %s306 = smul.addr %s305, 32
          %s307 = scalar_lea.vmem [#allocation5], %s306
          %308 = dma.done %s304, 512
        $region44: #{tpu_custom_call.1} parent=39 // pred_fallthru
          _
      $region40: #{tpu_custom_call.1} parent=5 // pred_fallthru
        _
    $region6: #{tpu_custom_call.1} parent=1 // loop_footer
      %s18 = sadd.s32 1, %s14
    $region7: #{tpu_custom_call.1} parent=1 // loop_footer_branch
      %13 = sbr.rel target = $region3
    $region8: #{tpu_custom_call.1} parent=1 // loop_exit
      _
    %309 = vsyncpa [#allocation3], 1
    %s310 = scalar_lea.sflag [#allocation3], 1
    %311 = vsyncpa %s310, 1
    %312 = vsyncpa [#allocation4], 1
    %s313 = scalar_lea.sflag [#allocation4], 1
    %314 = vsyncpa %s313, 1

</llo_original>
